<compile_context>
chip_gen: v5e
topology: v5e:2x2
jax: 0.10.0
libtpu: 0.0.40
codegen_flags: <defaults>
</compile_context>

<pallas_src>
import functools
import math

import jax
import jax.numpy as jnp
from jax.experimental import pallas as pl
from jax.experimental.pallas import tpu as pltpu


def _combined_margin_kernel(labels_ref, logits_ref, out_ref, *,
                            s, m1, m2, m3, icf_threshold, col_tile):
    """One (row_tile, col_tile) tile of the combined-margin transform.

    labels_ref : (TM, 1)  int32  - target class id per row
    logits_ref : (TM, TC) float  - cosine logits tile
    out_ref    : (TM, TC) float  - margin-adjusted, scaled logits tile
    """
    x = logits_ref[...]
    j = pl.program_id(1)
    # Global column index of each element in this tile.
    col = jax.lax.broadcasted_iota(jnp.int32, x.shape, dimension=1) + j * col_tile
    target_mask = col == labels_ref[...]          # (TM,1) broadcasts vs (TM,TC)

    if icf_threshold > 0:
        # dirty = (logits > thr) everywhere except the target column; zero them.
        dirty = jnp.logical_and(x > jnp.asarray(icf_threshold, x.dtype),
                                jnp.logical_not(target_mask))
        x = jnp.where(dirty, jnp.zeros_like(x), x)

    if m1 == 1.0 and m3 == 0.0:
        # ArcFace branch, closed form:
        #   cos(arccos(x) + m2) = x*cos(m2) - sqrt(1 - x^2)*sin(m2)
        # Non-target entries: cos(arccos(x)) == x for |x| <= 1.
        cos_m = math.cos(m2)
        sin_m = math.sin(m2)
        xf = x.astype(jnp.float32)
        xf = jnp.clip(xf, -1.0, 1.0)                       # guard arccos domain
        sin_t = jnp.sqrt(jnp.maximum(1.0 - xf * xf, 0.0))  # EUP sqrt, no NaN
        adj = xf * cos_m - sin_t * sin_m
        out = jnp.where(target_mask, adj, xf) * s
    elif m3 > 0:
        # CosFace branch: stay in the input dtype (bf16 native on v6e/v7x).
        out = jnp.where(target_mask, x - jnp.asarray(m3, x.dtype), x) * \
              jnp.asarray(s, x.dtype)
    else:
        # Mirrors the bare `raise` in the PyTorch module (trace-time error).
        raise ValueError("unsupported (m1, m3) combination")

    out_ref[...] = out.astype(out_ref.dtype)


def combined_margin_loss(logits, labels, *, s, m1, m2, m3,
                         interclass_filtering_threshold=0.0,
                         row_tile=None, col_tile=None):
    """Apply CombinedMarginLoss.forward to logits [N, C] with labels [N]."""
    N, C = logits.shape

    # --- tile selection -----------------------------------------------------
    if row_tile is None:
        for cand in (256, 128, 64, 32, 16, 8):
            if N % cand == 0:
                row_tile = cand
                break
        else:
            row_tile = N
    assert N % row_tile == 0, "row_tile must divide batch size"

    # Lane-dense column tile: multiple of 128, capped so (in + out) double
    # buffers stay well below the scoped VMEM default on every generation
    # (256x2048 f32 block = 2 MiB -> ~8 MiB resident).
    c_rounded = ((C + 127) // 128) * 128
    if col_tile is None:
        col_tile = min(2048, c_rounded)
    assert col_tile % 128 == 0, "col_tile must be a multiple of 128"

    # Pad the class dim to a multiple of the column tile (pad value 0 is safe:
    # never a target column, no NaN through sqrt, zeroed/sliced off below).
    C_pad = ((C + col_tile - 1) // col_tile) * col_tile
    if C_pad != C:
        logits_in = jnp.pad(logits, ((0, 0), (0, C_pad - C)))
    else:
        logits_in = logits

    labels2d = labels.astype(jnp.int32).reshape(N, 1)

    kernel = functools.partial(
        _combined_margin_kernel,
        s=float(s), m1=float(m1), m2=float(m2), m3=float(m3),
        icf_threshold=float(interclass_filtering_threshold),
        col_tile=int(col_tile),
    )

    grid = (N // row_tile, C_pad // col_tile)
    out = pl.pallas_call(
        kernel,
        out_shape=jax.ShapeDtypeStruct((N, C_pad), logits.dtype),
        grid_spec=pltpu.PrefetchScalarGridSpec(
            num_scalar_prefetch=0,
            grid=grid,
            in_specs=[
                pl.BlockSpec((row_tile, 1), lambda i, j: (i, 0)),        # labels
                pl.BlockSpec((row_tile, col_tile), lambda i, j: (i, j)),  # logits
            ],
            out_specs=pl.BlockSpec((row_tile, col_tile), lambda i, j: (i, j)),
        ),
        # Reuse the logits HBM buffer for the output (halves footprint for
        # large class counts); XLA inserts a copy if the input is still live.
        input_output_aliases={1: 0},
        compiler_params=pltpu.CompilerParams(
            dimension_semantics=("parallel", "parallel"),
        ),
    )(labels2d, logits_in)

    if C_pad != C:
        out = out[:, :C]
    return out


def _reference(logits, labels, *, s, m1, m2, m3, thr=0.0):
    """Pure-JAX reference mirroring the PyTorch forward (arccos/cos path)."""
    N, C = logits.shape
    x = logits.astype(jnp.float32)
    onehot = jax.nn.one_hot(labels, C, dtype=jnp.bool_)
    if thr > 0:
        dirty = jnp.logical_and(x > thr, jnp.logical_not(onehot))
        x = jnp.where(dirty, 0.0, x)
    if m1 == 1.0 and m3 == 0.0:
        theta = jnp.arccos(x)
        theta = jnp.where(onehot, theta + m2, theta)
        return (jnp.cos(theta) * s).astype(logits.dtype)
    elif m3 > 0:
        return (jnp.where(onehot, x - m3, x) * s).astype(logits.dtype)
    else:
        raise ValueError


if __name__ == "__main__":
    key = jax.random.PRNGKey(0)
    k_logit, k_label = jax.random.split(key)

    N, C = 8, 32  # batch=8, num_classes=32 (padded to 128 lanes internally)
    # Cosine logits live in (-1, 1); keep strictly inside for a safe arccos ref.
    logits = jax.random.uniform(k_logit, (N, C), dtype=jnp.float32,
                                minval=-0.95, maxval=0.95)
    labels = jax.random.randint(k_label, (N,), 0, C, dtype=jnp.int32)

    # --- ArcFace branch (standard config) ------------------------------------
    s, m1, m2, m3 = 64.0, 1.0, 0.5, 0.0
    thr = 0.0
    ref = _reference(logits, labels, s=s, m1=m1, m2=m2, m3=m3, thr=thr)
    out = combined_margin_loss(logits, labels, s=s, m1=m1, m2=m2, m3=m3,
                               interclass_filtering_threshold=thr)
    out = jax.block_until_ready(out)
    assert out.shape == (N, C) and out.dtype == logits.dtype
    assert jnp.allclose(out, ref, atol=1e-4, rtol=1e-4), "ArcFace mismatch"

    # --- CosFace branch -------------------------------------------------------
    s2, m1b, m2b, m3b = 64.0, 1.0, 0.0, 0.4
    ref2 = _reference(logits, labels, s=s2, m1=m1b, m2=m2b, m3=m3b, thr=thr)
    out2 = combined_margin_loss(logits, labels, s=s2, m1=m1b, m2=m2b, m3=m3b,
                                interclass_filtering_threshold=thr)
    out2 = jax.block_until_ready(out2)
    assert jnp.allclose(out2, ref2, atol=1e-4, rtol=1e-4), "CosFace mismatch"

    print("KERNEL_OK")
</pallas_src>

<mosaic_0001>
module attributes {stable_mosaic.version = 11 : i64} {
  func.func @_combined_margin_kernel(%arg0: i32, %arg1: i32, %arg2: memref<8x1xi32, #tpu.memory_space<vmem>>, %arg3: memref<8x128xf32, #tpu.memory_space<vmem>>, %arg4: memref<8x128xf32, #tpu.memory_space<vmem>>) attributes {dimension_semantics = [#tpu.dimension_semantics<parallel>, #tpu.dimension_semantics<parallel>], iteration_bounds = array<i64: 1, 1>, scalar_prefetch = 0 : i64, scratch_operands = 0 : i64, tpu.core_type = #tpu.core_type<tc>, window_params = [{transform_indices = @transform_0, window_bounds = array<i64: 8, 1>}, {transform_indices = @transform_1, window_bounds = array<i64: 8, 128>}, {transform_indices = @transform_2, window_bounds = array<i64: 8, 128>}]} {
    %c0 = arith.constant 0 : index
    %c0_0 = arith.constant 0 : index
    %0 = vector.load %arg3[%c0, %c0_0] : memref<8x128xf32, #tpu.memory_space<vmem>>, vector<8x128xf32>
    %1 = tpu.iota {dimensions = array<i32: 1>} : vector<8x128xi32>
    %c128_i32 = arith.constant 128 : i32
    %2 = arith.muli %arg1, %c128_i32 : i32
    %3 = vector.broadcast %2 : i32 to vector<8x128xi32>
    %4 = arith.addi %1, %3 : vector<8x128xi32>
    %c0_1 = arith.constant 0 : index
    %c0_2 = arith.constant 0 : index
    %5 = vector.load %arg2[%c0_1, %c0_2] : memref<8x1xi32, #tpu.memory_space<vmem>>, vector<8x1xi32>
    %6 = vector.broadcast %5 : vector<8x1xi32> to vector<8x128xi32>
    %7 = arith.cmpi eq, %4, %6 : vector<8x128xi32>
    %cst = arith.constant -1.000000e+00 : f32
    %cst_3 = arith.constant 1.000000e+00 : f32
    %8 = vector.broadcast %cst : f32 to vector<8x128xf32>
    %9 = arith.maximumf %8, %0 : vector<8x128xf32>
    %10 = vector.broadcast %cst_3 : f32 to vector<8x128xf32>
    %11 = arith.minimumf %10, %9 : vector<8x128xf32>
    %12 = arith.mulf %11, %11 : vector<8x128xf32>
    %cst_4 = arith.constant 1.000000e+00 : f32
    %13 = vector.broadcast %cst_4 : f32 to vector<8x128xf32>
    %14 = arith.subf %13, %12 : vector<8x128xf32>
    %cst_5 = arith.constant 0.000000e+00 : f32
    %15 = vector.broadcast %cst_5 : f32 to vector<8x128xf32>
    %16 = arith.maximumf %14, %15 : vector<8x128xf32>
    %17 = math.sqrt %16 : vector<8x128xf32>
    %cst_6 = arith.constant 0.87758255 : f32
    %18 = vector.broadcast %cst_6 : f32 to vector<8x128xf32>
    %19 = arith.mulf %11, %18 : vector<8x128xf32>
    %cst_7 = arith.constant 0.47942555 : f32
    %20 = vector.broadcast %cst_7 : f32 to vector<8x128xf32>
    %21 = arith.mulf %17, %20 : vector<8x128xf32>
    %22 = arith.subf %19, %21 : vector<8x128xf32>
    %23 = arith.select %7, %22, %11 : vector<8x128xi1>, vector<8x128xf32>
    %cst_8 = arith.constant 6.400000e+01 : f32
    %24 = vector.broadcast %cst_8 : f32 to vector<8x128xf32>
    %25 = arith.mulf %23, %24 : vector<8x128xf32>
    %c0_9 = arith.constant 0 : index
    %c0_10 = arith.constant 0 : index
    %26 = vector.load %arg4[%c0_9, %c0_10] : memref<8x128xf32, #tpu.memory_space<vmem>>, vector<8x128xf32>
    tpu.vector_store %arg4[%c0_9, %c0_10], %25 {strides = array<i32>} : memref<8x128xf32, #tpu.memory_space<vmem>>, vector<8x128xf32>,
    return
  }
  func.func @transform_0(%arg0: i32, %arg1: i32) -> (i32, i32) {
    %c0_i32 = arith.constant 0 : i32
    %c0_i32_0 = arith.constant 0 : i32
    return %arg0, %c0_i32 : i32, i32
  }
  func.func @transform_1(%arg0: i32, %arg1: i32) -> (i32, i32) {
    %c0_i32 = arith.constant 0 : i32
    return %arg0, %arg1 : i32, i32
  }
  func.func @transform_2(%arg0: i32, %arg1: i32) -> (i32, i32) {
    %c0_i32 = arith.constant 0 : i32
    return %arg0, %arg1 : i32, i32
  }
}

</mosaic_0001>

<llo_original>
// kernel: tpu_custom_call.1
$region0: #{tpu_custom_call.1}
  #allocation0 [shape = 'u32[]', space=smem, size = 0x4, offset = 0x4, fixed_abs, tag = 'smem constant byte address 0x4 - core index']
  #allocation1 [shape = 'u32[72,128]{1,0:T(1,128)}', space=vmem, size = 0x9000, scoped, tag = 'internal scratch']
  %s0 = inlined_call_operand.vmem [shape: s32[8,1], index: 0, kind: input, shape index: {}]
  %s1 = inlined_call_operand.hbm [shape: f32[8,128], index: 1, kind: input, shape index: {}, may-alias: {1,2}]
  %s2 = inlined_call_operand.hbm [shape: f32[8,128], index: 2, kind: output, shape index: {}, may-alias: {1,2}]
  %s3 = sld [smem:[#allocation0]]
  $region22: #{tpu_custom_call.1} parent=0
    _
  %s5 = ssub.s32 1, %s3
  %s6 = scalar_select 0, %s5, %s3
  $region1: #{tpu_custom_call.1} parent=0
    #allocation2 [shape = 'u8[4096]{0}', space=vmem, size = 0x1000, scoped, tag = 'input window, operand 1, single buffered']
    #allocation3 [shape = 's32[1]{0}', space=sflag, size = 0x4, scoped, tag = 'scoped memory for tpu_custom_call.1']
    #allocation4 [shape = 's32[1]{0}', space=sflag, size = 0x4, scoped, tag = 'scoped memory for tpu_custom_call.1']
    #allocation5 [shape = 'u8[4096]{0}', space=vmem, size = 0x1000, scoped, tag = 'output window, operand 0, single buffered']
    %7 = vsyncpa [#allocation3], 0
    %8 = vsyncpa [#allocation4], 0
    // Predicated region
    $region2: #{tpu_custom_call.1} parent=1 // pred_check
      _
    $region3: #{tpu_custom_call.1} parent=1 // pred_check_branch
      %10 = sbr.rel (0) target = $region5
    $region4: #{tpu_custom_call.1} parent=1 // pred_region
      _
    $region5: #{tpu_custom_call.1} parent=1 // pred_fallthru
      _
    // Predicated region
    $region6: #{tpu_custom_call.1} parent=1 // pred_check
      _
    $region7: #{tpu_custom_call.1} parent=1 // pred_check_branch
      %12 = sbr.rel (0) target = $region9
    $region8: #{tpu_custom_call.1} parent=1 // pred_region
      %14 = vsyncadd [#allocation3], 0
      %s16 = sshll.u32 %s1, 4
      %s17 = int_to_ptr.hbm [resolvable:$true] %s16
      %s18 = sshll.u32 [#allocation2], 4
      %s19 = int_to_ptr.vmem [resolvable:$true] %s18
      %21 = dma.hbm_to_vmem [thread:$0]  %s17, 128, %s19, [#allocation3]
    $region9: #{tpu_custom_call.1} parent=1 // pred_fallthru
      _
    // Predicated region
    $region10: #{tpu_custom_call.1} parent=1 // pred_check
      _
    $region11: #{tpu_custom_call.1} parent=1 // pred_check_branch
      %23 = sbr.rel (0) target = $region13
    $region12: #{tpu_custom_call.1} parent=1 // pred_region
      %25 = dma.done [#allocation3], 128
    $region13: #{tpu_custom_call.1} parent=1 // pred_fallthru
      _
    %v26 = vld [vmem:[#allocation2] sm:$0xff]
    %v27 = vlaneseq
    %v28 = vand.u32 %v27, 127
    %s29 = smul.u32 0, 128
    %v30 = vstv %s29
    %v31 = vadd.s32 %v28, %v30
    %v32 = vld [vmem:[%s0] sm:$0xff]
    %33 = vset.pattern.permute.xlu0 0
    %34 = vperm.xlu0 %33, %v32
    %v35 = vpop.permute.xlu0 %34
    %vm36 = vcmp.eq.s32.totalorder %v31, %v35
    %v37 = vmax.f32 %v26, -1.0
    %v38 = vmin.f32 %v37, 1.0
    %v39 = vmul.f32 %v38, %v38
    %v40 = vsub.f32 1.0, %v39
    %v41 = vmax.f32 %v40, 0.0
    %v42 = vrsqrt.pop %v41
    %v43 = vmul.f32 %v42, %v41
    %v44 = vmul.f32 %v43, %v42
    %v45 = vmul.f32 0.5, %v44
    %v46 = vsub.f32 1.5, %v45
    %v47 = vmul.f32 %v42, %v46
    %v48 = vmul.f32 %v41, %v47
    %vm49 = vcmp.eq.f32.partialorder %v41, inf
    %v50 = vsel %vm49, %v41, %v48
    %vm51 = vcmp.eq.f32.partialorder %v41, 0.0
    %v52 = vand.u32 %v41, 2147483648
    %v53 = vsel %vm51, %v52, %v50
    %v54 = vmul.f32 %v38, 0.87758255
    %v55 = vmul.f32 %v53, 0.47942555
    %v56 = vsub.f32 %v54, %v55
    %v57 = vsel %vm36, %v56, %v38
    %v58 = vmul.f32 %v57, 64.0
    %59 = vst [vmem:[#allocation5] sm:$0xff] %v58
    // Predicated region
    $region14: #{tpu_custom_call.1} parent=1 // pred_check
      _
    $region15: #{tpu_custom_call.1} parent=1 // pred_check_branch
      %61 = sbr.rel (0) target = $region17
    $region16: #{tpu_custom_call.1} parent=1 // pred_region
      %63 = vsyncadd [#allocation4], 0
      %s65 = sshll.u32 [#allocation5], 4
      %s66 = int_to_ptr.vmem [resolvable:$true] %s65
      %s67 = sshll.u32 %s2, 4
      %s68 = int_to_ptr.hbm [resolvable:$true] %s67
      %70 = dma.vmem_to_hbm [thread:$0]  %s66, 128, %s68, [#allocation4]
    $region17: #{tpu_custom_call.1} parent=1 // pred_fallthru
      _
    // Predicated region
    $region18: #{tpu_custom_call.1} parent=1 // pred_check
      _
    $region19: #{tpu_custom_call.1} parent=1 // pred_check_branch
      %72 = sbr.rel (0) target = $region21
    $region20: #{tpu_custom_call.1} parent=1 // pred_region
      %74 = dma.done [#allocation4], 128
    $region21: #{tpu_custom_call.1} parent=1 // pred_fallthru
      _
    %75 = vsyncpa [#allocation3], 1
    %76 = vsyncpa [#allocation4], 1

</llo_original>
